<compile_context>
chip_gen: v6e
topology: v6e:2x2x1
jax: 0.10.0
libtpu: 0.0.40
codegen_flags: <defaults>
</compile_context>

<pallas_src>
import math
from functools import partial

import jax
import jax.numpy as jnp
import numpy as np
from jax import lax
from jax.experimental import pallas as pl
from jax.experimental.pallas import tpu as pltpu


def _ghost_kernel(x_ref, w1_ref, b1_ref, wd_ref, b2_ref, out_ref, pad_ref, *,
                  oup, init_channels, ratio, dw, pad, H, W, HWp, relu):
    """GhostModule forward for one batch element, lane-dense (C, HWp) layout.

    x_ref   : (1, inp, HWp)                        VMEM  (HWp = HW padded to 128)
    w1_ref  : (init_channels, inp)                 VMEM  1x1 conv weights, BN1 scale folded
    b1_ref  : (init_channels, 1)                   VMEM  BN1 folded shift
    wd_ref  : (ratio-1, dw*dw, init_channels, 1)   VMEM  depthwise taps, BN2 scale folded
    b2_ref  : (ratio-1, init_channels, 1)          VMEM  BN2 folded shift
    out_ref : (1, oup, HWp)                        VMEM
    pad_ref : (init_channels, HWp + 2*pad*(W+1))   VMEM scratch (row-padded flat x1)
    """
    HW = H * W
    OFF = pad * (W + 1)        # front halo of the flattened row-padded buffer

    # ---- primary conv: 1x1 pointwise as a single MXU matmul (+b1, ReLU) ----
    # Operands stay in the caller's dtype; accumulate in f32 on the MXU.
    x1 = jnp.dot(w1_ref[...], x_ref[0], preferred_element_type=jnp.float32)
    x1 = x1 + b1_ref[...]                                       # (init, HWp)
    if relu:
        x1 = jnp.maximum(x1, 0.0)

    # x1 channels are the first init_channels output channels (concat order).
    out_ref[0, 0:init_channels, :] = x1.astype(out_ref.dtype)

    # Row-padded flat x1 for the depthwise conv.  Store x1 first, then zero the
    # small halo regions (the back-halo store also wipes the garbage that the
    # lane padding of x produced in lanes [HW, HW+OFF)).
    pad_ref[:, OFF:OFF + HWp] = x1
    if pad > 0:
        zeros_halo = jnp.zeros((init_channels, OFF), jnp.float32)
        pad_ref[:, 0:OFF] = zeros_halo
        pad_ref[:, OFF + HW:OFF + HW + OFF] = zeros_halo

    # Column-edge validity masks (flat row-padded buffer has no column halo):
    # a dx-shifted read that crosses a row boundary must be zeroed.
    col = lax.broadcasted_iota(jnp.int32, (1, HWp), 1) % W
    col_ok = {dx: jnp.logical_and(col + dx >= 0, col + dx < W)
              for dx in range(-pad, pad + 1) if dx != 0}

    # ---- cheap operation: depthwise dw x dw conv (+b2, ReLU) -> x2 ----
    # Taps grouped by dx so each column mask is applied once per group.
    n_keep = oup - init_channels       # ghost channels kept by out[:, :oup]
    for r in range(ratio - 1):         # GhostNet default: ratio=2 -> one replica
        wr = wd_ref[r]                                   # (dw*dw, init, 1), f32
        acc = None
        for kw in range(dw):
            dx = kw - pad
            part = None
            for kh in range(dw):
                dy = kh - pad
                start = OFF + dy * W + dx                # >= 0 for pad = dw//2
                slab = pad_ref[:, start:start + HWp]     # (init, HWp)
                term = slab * wr[kh * dw + kw]           # (init,1) bcast
                part = term if part is None else part + term
            if dx != 0:
                part = jnp.where(col_ok[dx], part, 0.0)
            acc = part if acc is None else acc + part
        h = acc + b2_ref[r]
        if relu:
            h = jnp.maximum(h, 0.0)
        h = h.astype(out_ref.dtype)
        if ratio == 2:
            out_ref[0, init_channels:init_channels + n_keep, :] = h[0:n_keep]
        else:
            # TODO(synk): ratio > 2 interleaves replica channels in the concat;
            # per-channel fallback (GhostNet only ever uses ratio=2).
            for g in range(init_channels):
                j = g * (ratio - 1) + r
                if init_channels + j < oup:
                    out_ref[0, init_channels + j, :] = h[g]


def ghost_module(x, w1, s1, b1, wd, s2, b2, *, oup, ratio=2, dw_size=3,
                 relu=True, mxu_dtype=None):
    """Fused GhostModule forward (eval-mode BN folded into weights/shift).

    x : (N, inp, H, W), w1 : (init, inp), wd : (new, dw*dw),
    s1/b1 : (init,), s2/b2 : (new,)  ->  (N, oup, H, W)

    mxu_dtype: optional dtype (e.g. jnp.bfloat16) to feed the 1x1 matmul in.
    """
    N, inp, H, W = x.shape
    init_channels = math.ceil(oup / ratio)
    pad = dw_size // 2
    HW = H * W
    HWp = ((HW + 127) // 128) * 128            # lane-dense (multiple of 128)
    taps = dw_size * dw_size

    # Lane-dense presentation (C, HWp).
    x_flat = x.reshape(N, inp, HW)
    if HWp != HW:
        x_flat = jnp.pad(x_flat, ((0, 0), (0, 0), (0, HWp - HW)))

    # BN1 scale folded into the 1x1 conv weights: x1 = (s1*w1) @ x + b1.
    w1f = w1.astype(jnp.float32) * s1.astype(jnp.float32)[:, None]
    if mxu_dtype is not None:
        x_flat = x_flat.astype(mxu_dtype)
        w1f = w1f.astype(mxu_dtype)
    else:
        w1f = w1f.astype(x.dtype)
    b1c = b1.reshape(init_channels, 1).astype(jnp.float32)

    # BN2 scale folded into the depthwise taps.  Grouped layout:
    # output channel j = g*(ratio-1) + r  ->  index [r, :, g].
    wd_f = wd.astype(jnp.float32) * s2.astype(jnp.float32)[:, None]   # (new, taps)
    wd_g = (wd_f.reshape(init_channels, ratio - 1, taps)
                .transpose(1, 2, 0)[..., None])                       # (r, taps, init, 1)
    b2c = b2.reshape(init_channels, ratio - 1).T[..., None].astype(jnp.float32)

    kernel = partial(
        _ghost_kernel,
        oup=oup, init_channels=init_channels, ratio=ratio,
        dw=dw_size, pad=pad, H=H, W=W, HWp=HWp, relu=relu,
    )

    vmem = lambda: pl.BlockSpec(memory_space=pltpu.MemorySpace.VMEM)

    # Explicit VMEM budget: 2x in-block + 2x out-block + scratch + weights,
    # clamped to a range safe on v5e (16 MiB scoped default) and v7x (64 MiB
    # physical).  Tiny for these shapes; matters for big HW / packed batches.
    itemsize_x = jnp.dtype(x_flat.dtype).itemsize
    itemsize_o = jnp.dtype(x.dtype).itemsize
    scratch_w = HWp + 2 * pad * (W + 1)
    vmem_need = (2 * inp * HWp * itemsize_x
                 + 2 * oup * HWp * itemsize_o
                 + init_channels * scratch_w * 4
                 + (w1f.size * jnp.dtype(w1f.dtype).itemsize
                    + 4 * (b1c.size + wd_g.size + b2c.size)))
    vmem_limit = int(min(max(2 * vmem_need, 16 << 20), 48 << 20))

    out_flat = pl.pallas_call(
        kernel,
        out_shape=jax.ShapeDtypeStruct((N, oup, HWp), x.dtype),
        grid=(N,),
        in_specs=[
            pl.BlockSpec((1, inp, HWp), lambda n: (n, 0, 0)),  # one image per step
            vmem(),  # w1 (BN1 scale folded)
            vmem(),  # b1
            vmem(),  # wd (BN2 scale folded)
            vmem(),  # b2
        ],
        out_specs=pl.BlockSpec((1, oup, HWp), lambda n: (n, 0, 0)),
        scratch_shapes=[
            pltpu.VMEM((init_channels, scratch_w), jnp.float32),
        ],
        compiler_params=pltpu.CompilerParams(
            dimension_semantics=("parallel",),
            vmem_limit_bytes=vmem_limit,
        ),
    )(x_flat, w1f, b1c, wd_g, b2c)

    return out_flat[..., :HW].reshape(N, oup, H, W)


def ghost_module_ref(x, w1, s1, b1, wd, s2, b2, *, oup, ratio=2, dw_size=3, relu=True):
    """Pure-JAX reference (lax convs), mirrors the PyTorch forward in eval mode."""
    init_channels = math.ceil(oup / ratio)
    new_channels = init_channels * (ratio - 1)

    w1_4d = w1[:, :, None, None]  # OIHW, 1x1
    x1 = lax.conv_general_dilated(x, w1_4d, (1, 1), "VALID",
                                  dimension_numbers=("NCHW", "OIHW", "NCHW"))
    x1 = x1 * s1[None, :, None, None] + b1[None, :, None, None]
    if relu:
        x1 = jnp.maximum(x1, 0.0)

    wd_4d = wd.reshape(new_channels, 1, dw_size, dw_size)  # OIHW, grouped
    p = dw_size // 2
    x2 = lax.conv_general_dilated(x1, wd_4d, (1, 1), [(p, p), (p, p)],
                                  dimension_numbers=("NCHW", "OIHW", "NCHW"),
                                  feature_group_count=init_channels)
    x2 = x2 * s2[None, :, None, None] + b2[None, :, None, None]
    if relu:
        x2 = jnp.maximum(x2, 0.0)

    out = jnp.concatenate([x1, x2], axis=1)
    return out[:, :oup]


if __name__ == "__main__":
    # Module config (defaults: kernel_size=1, ratio=2, dw_size=3, stride=1, relu=True)
    N, inp, H, W = 2, 4, 16, 16
    oup, ratio, dw_size = 8, 2, 3
    init_channels = math.ceil(oup / ratio)       # 4
    new_channels = init_channels * (ratio - 1)   # 4
    eps = 1e-5

    key = jax.random.PRNGKey(0)
    ks = jax.random.split(key, 12)

    x = jax.random.normal(ks[0], (N, inp, H, W), jnp.float32)

    # primary_conv: Conv2d(inp, init_channels, 1, bias=False) + BatchNorm2d
    w1 = jax.random.normal(ks[1], (init_channels, inp), jnp.float32) * 0.3
    g1 = 1.0 + 0.1 * jax.random.normal(ks[2], (init_channels,), jnp.float32)
    be1 = 0.1 * jax.random.normal(ks[3], (init_channels,), jnp.float32)
    m1 = 0.1 * jax.random.normal(ks[4], (init_channels,), jnp.float32)
    v1 = jax.random.uniform(ks[5], (init_channels,), jnp.float32, 0.5, 1.5)
    s1 = g1 / jnp.sqrt(v1 + eps)
    b1 = be1 - m1 * s1

    # cheap_operation: Conv2d(init, new, 3, groups=init, bias=False) + BatchNorm2d
    wd = jax.random.normal(ks[6], (new_channels, dw_size * dw_size), jnp.float32) * 0.3
    g2 = 1.0 + 0.1 * jax.random.normal(ks[7], (new_channels,), jnp.float32)
    be2 = 0.1 * jax.random.normal(ks[8], (new_channels,), jnp.float32)
    m2 = 0.1 * jax.random.normal(ks[9], (new_channels,), jnp.float32)
    v2 = jax.random.uniform(ks[10], (new_channels,), jnp.float32, 0.5, 1.5)
    s2 = g2 / jnp.sqrt(v2 + eps)
    b2 = be2 - m2 * s2

    out = ghost_module(x, w1, s1, b1, wd, s2, b2, oup=oup, ratio=ratio,
                       dw_size=dw_size, relu=True)
    out = jax.block_until_ready(out)

    ref = ghost_module_ref(x, w1, s1, b1, wd, s2, b2, oup=oup, ratio=ratio,
                           dw_size=dw_size, relu=True)
    np.testing.assert_allclose(np.asarray(out), np.asarray(ref), rtol=1e-4, atol=1e-4)

    print("KERNEL_OK")
</pallas_src>

<mosaic_0001>
module attributes {stable_mosaic.version = 11 : i64} {
  func.func @_ghost_kernel(%arg0: i32, %arg1: memref<1x4x256xf32, #tpu.memory_space<vmem>>, %arg2: memref<4x4xf32, #tpu.memory_space<vmem>>, %arg3: memref<4x1xf32, #tpu.memory_space<vmem>>, %arg4: memref<1x9x4x1xf32, #tpu.memory_space<vmem>>, %arg5: memref<1x4x1xf32, #tpu.memory_space<vmem>>, %arg6: memref<1x8x256xf32, #tpu.memory_space<vmem>>, %arg7: memref<4x290xf32, #tpu.memory_space<vmem>>) attributes {dimension_semantics = [#tpu.dimension_semantics<parallel>], iteration_bounds = array<i64: 2>, scalar_prefetch = 0 : i64, scratch_operands = 1 : i64, tpu.core_type = #tpu.core_type<tc>, window_params = [{transform_indices = @transform_0, window_bounds = array<i64: 1, 4, 256>}, {pipeline_mode = #tpu.pipeline_mode<synchronous>, transform_indices = @transform_1, window_bounds = array<i64: 4, 4>}, {pipeline_mode = #tpu.pipeline_mode<synchronous>, transform_indices = @transform_2, window_bounds = array<i64: 4, 1>}, {pipeline_mode = #tpu.pipeline_mode<synchronous>, transform_indices = @transform_3, window_bounds = array<i64: 1, 9, 4, 1>}, {pipeline_mode = #tpu.pipeline_mode<synchronous>, transform_indices = @transform_4, window_bounds = array<i64: 1, 4, 1>}, {transform_indices = @transform_5, window_bounds = array<i64: 1, 8, 256>}]} {
    %c0 = arith.constant 0 : index
    %c0_0 = arith.constant 0 : index
    %0 = vector.load %arg2[%c0, %c0_0] : memref<4x4xf32, #tpu.memory_space<vmem>>, vector<4x4xf32>
    %c0_1 = arith.constant 0 : index
    %c0_2 = arith.constant 0 : index
    %c0_3 = arith.constant 0 : index
    %1 = vector.load %arg1[%c0_1, %c0_2, %c0_3] : memref<1x4x256xf32, #tpu.memory_space<vmem>>, vector<1x4x256xf32>
    %2 = vector.shape_cast %1 : vector<1x4x256xf32> to vector<4x256xf32>
    %cst = arith.constant dense<0.000000e+00> : vector<4x256xf32>
    %3 = tpu.matmul %0, %2, %cst {dimension_numbers = #tpu.dot_dimension_numbers<[1], [0], [0], [1], [0, 0, 1, 1], [], []>} : vector<4x4xf32>, vector<4x256xf32>, vector<4x256xf32> -> vector<4x256xf32>
    %c0_4 = arith.constant 0 : index
    %c0_5 = arith.constant 0 : index
    %4 = vector.load %arg3[%c0_4, %c0_5] : memref<4x1xf32, #tpu.memory_space<vmem>>, vector<4x1xf32>
    %5 = vector.broadcast %4 : vector<4x1xf32> to vector<4x256xf32>
    %6 = arith.addf %3, %5 : vector<4x256xf32>
    %cst_6 = arith.constant 0.000000e+00 : f32
    %7 = vector.broadcast %cst_6 : f32 to vector<4x256xf32>
    %8 = arith.maximumf %6, %7 : vector<4x256xf32>
    %c0_7 = arith.constant 0 : index
    %c0_8 = arith.constant 0 : index
    %c0_9 = arith.constant 0 : index
    %9 = vector.load %arg6[%c0_7, %c0_8, %c0_9] : memref<1x8x256xf32, #tpu.memory_space<vmem>>, vector<1x4x256xf32>
    %10 = vector.shape_cast %9 : vector<1x4x256xf32> to vector<4x256xf32>
    %11 = vector.shape_cast %8 : vector<4x256xf32> to vector<1x4x256xf32>
    tpu.vector_store %arg6[%c0_7, %c0_8, %c0_9], %11 {strides = array<i32>} : memref<1x8x256xf32, #tpu.memory_space<vmem>>, vector<1x4x256xf32>,
    %c0_10 = arith.constant 0 : index
    %c17 = arith.constant 17 : index
    %12 = vector.load %arg7[%c0_10, %c17] : memref<4x290xf32, #tpu.memory_space<vmem>>, vector<4x256xf32>
    tpu.vector_store %arg7[%c0_10, %c17], %8 {strides = array<i32>} : memref<4x290xf32, #tpu.memory_space<vmem>>, vector<4x256xf32>,
    %cst_11 = arith.constant 0.000000e+00 : f32
    %13 = vector.broadcast %cst_11 : f32 to vector<4x17xf32>
    %c0_12 = arith.constant 0 : index
    %c0_13 = arith.constant 0 : index
    %14 = vector.load %arg7[%c0_12, %c0_13] : memref<4x290xf32, #tpu.memory_space<vmem>>, vector<4x17xf32>
    tpu.vector_store %arg7[%c0_12, %c0_13], %13 {strides = array<i32>} : memref<4x290xf32, #tpu.memory_space<vmem>>, vector<4x17xf32>,
    %c0_14 = arith.constant 0 : index
    %c273 = arith.constant 273 : index
    %15 = vector.load %arg7[%c0_14, %c273] : memref<4x290xf32, #tpu.memory_space<vmem>>, vector<4x17xf32>
    tpu.vector_store %arg7[%c0_14, %c273], %13 {strides = array<i32>} : memref<4x290xf32, #tpu.memory_space<vmem>>, vector<4x17xf32>,
    %16 = tpu.iota {dimensions = array<i32: 1>} : vector<1x256xi32>
    %c16_i32 = arith.constant 16 : i32
    %c0_i32 = arith.constant 0 : i32
    %17 = arith.cmpi eq, %c16_i32, %c0_i32 : i32
    %c1_i32 = arith.constant 1 : i32
    %18 = arith.select %17, %c1_i32, %c16_i32 : i32
    %19 = vector.broadcast %18 : i32 to vector<1x256xi32>
    %20 = arith.remsi %16, %19 : vector<1x256xi32>
    %c0_i32_15 = arith.constant 0 : i32
    %21 = vector.broadcast %c0_i32_15 : i32 to vector<1x256xi32>
    %22 = arith.cmpi ne, %20, %21 : vector<1x256xi32>
    %c0_i32_16 = arith.constant 0 : i32
    %23 = vector.broadcast %c0_i32_16 : i32 to vector<1x256xi32>
    %24 = arith.cmpi slt, %20, %23 : vector<1x256xi32>
    %c0_i32_17 = arith.constant 0 : i32
    %25 = arith.cmpi slt, %18, %c0_i32_17 : i32
    %26 = vector.broadcast %25 : i1 to vector<1x256xi1>
    %27 = vector.broadcast %26 : vector<1x256xi1> to vector<1x256xi1>
    %28 = arith.xori %24, %27 : vector<1x256xi1>
    %29 = arith.andi %28, %22 : vector<1x256xi1>
    %30 = vector.broadcast %18 : i32 to vector<1x256xi32>
    %31 = arith.addi %20, %30 : vector<1x256xi32>
    %32 = arith.select %29, %31, %20 : vector<1x256xi1>, vector<1x256xi32>
    %c-1_i32 = arith.constant -1 : i32
    %33 = vector.broadcast %c-1_i32 : i32 to vector<1x256xi32>
    %34 = arith.addi %32, %33 : vector<1x256xi32>
    %c0_i32_18 = arith.constant 0 : i32
    %35 = vector.broadcast %c0_i32_18 : i32 to vector<1x256xi32>
    %36 = arith.cmpi sge, %34, %35 : vector<1x256xi32>
    %c-1_i32_19 = arith.constant -1 : i32
    %37 = vector.broadcast %c-1_i32_19 : i32 to vector<1x256xi32>
    %38 = arith.addi %32, %37 : vector<1x256xi32>
    %c16_i32_20 = arith.constant 16 : i32
    %39 = vector.broadcast %c16_i32_20 : i32 to vector<1x256xi32>
    %40 = arith.cmpi slt, %38, %39 : vector<1x256xi32>
    %41 = arith.andi %36, %40 : vector<1x256xi1>
    %c1_i32_21 = arith.constant 1 : i32
    %42 = vector.broadcast %c1_i32_21 : i32 to vector<1x256xi32>
    %43 = arith.addi %32, %42 : vector<1x256xi32>
    %c0_i32_22 = arith.constant 0 : i32
    %44 = vector.broadcast %c0_i32_22 : i32 to vector<1x256xi32>
    %45 = arith.cmpi sge, %43, %44 : vector<1x256xi32>
    %c1_i32_23 = arith.constant 1 : i32
    %46 = vector.broadcast %c1_i32_23 : i32 to vector<1x256xi32>
    %47 = arith.addi %32, %46 : vector<1x256xi32>
    %c16_i32_24 = arith.constant 16 : i32
    %48 = vector.broadcast %c16_i32_24 : i32 to vector<1x256xi32>
    %49 = arith.cmpi slt, %47, %48 : vector<1x256xi32>
    %50 = arith.andi %45, %49 : vector<1x256xi1>
    %c0_25 = arith.constant 0 : index
    %c0_26 = arith.constant 0 : index
    %c0_27 = arith.constant 0 : index
    %c0_28 = arith.constant 0 : index
    %51 = vector.load %arg4[%c0_25, %c0_26, %c0_27, %c0_28] : memref<1x9x4x1xf32, #tpu.memory_space<vmem>>, vector<1x9x4x1xf32>
    %52 = vector.shape_cast %51 : vector<1x9x4x1xf32> to vector<9x4x1xf32>
    %c0_29 = arith.constant 0 : index
    %c0_30 = arith.constant 0 : index
    %53 = vector.load %arg7[%c0_29, %c0_30] : memref<4x290xf32, #tpu.memory_space<vmem>>, vector<4x256xf32>
    %54 = vector.extract_strided_slice %52 {offsets = [0, 0, 0], sizes = [1, 4, 1], strides = [1, 1, 1]} : vector<9x4x1xf32> to vector<1x4x1xf32>
    %55 = vector.shape_cast %54 : vector<1x4x1xf32> to vector<4x1xf32>
    %56 = vector.broadcast %55 : vector<4x1xf32> to vector<4x256xf32>
    %57 = arith.mulf %53, %56 : vector<4x256xf32>
    %c0_31 = arith.constant 0 : index
    %c16 = arith.constant 16 : index
    %58 = vector.load %arg7[%c0_31, %c16] : memref<4x290xf32, #tpu.memory_space<vmem>>, vector<4x256xf32>
    %59 = vector.extract_strided_slice %52 {offsets = [3, 0, 0], sizes = [1, 4, 1], strides = [1, 1, 1]} : vector<9x4x1xf32> to vector<1x4x1xf32>
    %60 = vector.shape_cast %59 : vector<1x4x1xf32> to vector<4x1xf32>
    %61 = vector.broadcast %60 : vector<4x1xf32> to vector<4x256xf32>
    %62 = arith.mulf %58, %61 : vector<4x256xf32>
    %63 = arith.addf %57, %62 : vector<4x256xf32>
    %c0_32 = arith.constant 0 : index
    %c32 = arith.constant 32 : index
    %64 = vector.load %arg7[%c0_32, %c32] : memref<4x290xf32, #tpu.memory_space<vmem>>, vector<4x256xf32>
    %65 = vector.extract_strided_slice %52 {offsets = [6, 0, 0], sizes = [1, 4, 1], strides = [1, 1, 1]} : vector<9x4x1xf32> to vector<1x4x1xf32>
    %66 = vector.shape_cast %65 : vector<1x4x1xf32> to vector<4x1xf32>
    %67 = vector.broadcast %66 : vector<4x1xf32> to vector<4x256xf32>
    %68 = arith.mulf %64, %67 : vector<4x256xf32>
    %69 = arith.addf %63, %68 : vector<4x256xf32>
    %cst_33 = arith.constant 0.000000e+00 : f32
    %70 = vector.shape_cast %41 : vector<1x256xi1> to vector<1x256xi1>
    %71 = vector.broadcast %70 : vector<1x256xi1> to vector<4x256xi1>
    %72 = vector.broadcast %cst_33 : f32 to vector<4x256xf32>
    %73 = arith.select %71, %69, %72 : vector<4x256xi1>, vector<4x256xf32>
    %c0_34 = arith.constant 0 : index
    %c1 = arith.constant 1 : index
    %74 = vector.load %arg7[%c0_34, %c1] : memref<4x290xf32, #tpu.memory_space<vmem>>, vector<4x256xf32>
    %75 = vector.extract_strided_slice %52 {offsets = [1, 0, 0], sizes = [1, 4, 1], strides = [1, 1, 1]} : vector<9x4x1xf32> to vector<1x4x1xf32>
    %76 = vector.shape_cast %75 : vector<1x4x1xf32> to vector<4x1xf32>
    %77 = vector.broadcast %76 : vector<4x1xf32> to vector<4x256xf32>
    %78 = arith.mulf %74, %77 : vector<4x256xf32>
    %c0_35 = arith.constant 0 : index
    %c17_36 = arith.constant 17 : index
    %79 = vector.load %arg7[%c0_35, %c17_36] : memref<4x290xf32, #tpu.memory_space<vmem>>, vector<4x256xf32>
    %80 = vector.extract_strided_slice %52 {offsets = [4, 0, 0], sizes = [1, 4, 1], strides = [1, 1, 1]} : vector<9x4x1xf32> to vector<1x4x1xf32>
    %81 = vector.shape_cast %80 : vector<1x4x1xf32> to vector<4x1xf32>
    %82 = vector.broadcast %81 : vector<4x1xf32> to vector<4x256xf32>
    %83 = arith.mulf %79, %82 : vector<4x256xf32>
    %84 = arith.addf %78, %83 : vector<4x256xf32>
    %c0_37 = arith.constant 0 : index
    %c33 = arith.constant 33 : index
    %85 = vector.load %arg7[%c0_37, %c33] : memref<4x290xf32, #tpu.memory_space<vmem>>, vector<4x256xf32>
    %86 = vector.extract_strided_slice %52 {offsets = [7, 0, 0], sizes = [1, 4, 1], strides = [1, 1, 1]} : vector<9x4x1xf32> to vector<1x4x1xf32>
    %87 = vector.shape_cast %86 : vector<1x4x1xf32> to vector<4x1xf32>
    %88 = vector.broadcast %87 : vector<4x1xf32> to vector<4x256xf32>
    %89 = arith.mulf %85, %88 : vector<4x256xf32>
    %90 = arith.addf %84, %89 : vector<4x256xf32>
    %91 = arith.addf %73, %90 : vector<4x256xf32>
    %c0_38 = arith.constant 0 : index
    %c2 = arith.constant 2 : index
    %92 = vector.load %arg7[%c0_38, %c2] : memref<4x290xf32, #tpu.memory_space<vmem>>, vector<4x256xf32>
    %93 = vector.extract_strided_slice %52 {offsets = [2, 0, 0], sizes = [1, 4, 1], strides = [1, 1, 1]} : vector<9x4x1xf32> to vector<1x4x1xf32>
    %94 = vector.shape_cast %93 : vector<1x4x1xf32> to vector<4x1xf32>
    %95 = vector.broadcast %94 : vector<4x1xf32> to vector<4x256xf32>
    %96 = arith.mulf %92, %95 : vector<4x256xf32>
    %c0_39 = arith.constant 0 : index
    %c18 = arith.constant 18 : index
    %97 = vector.load %arg7[%c0_39, %c18] : memref<4x290xf32, #tpu.memory_space<vmem>>, vector<4x256xf32>
    %98 = vector.extract_strided_slice %52 {offsets = [5, 0, 0], sizes = [1, 4, 1], strides = [1, 1, 1]} : vector<9x4x1xf32> to vector<1x4x1xf32>
    %99 = vector.shape_cast %98 : vector<1x4x1xf32> to vector<4x1xf32>
    %100 = vector.broadcast %99 : vector<4x1xf32> to vector<4x256xf32>
    %101 = arith.mulf %97, %100 : vector<4x256xf32>
    %102 = arith.addf %96, %101 : vector<4x256xf32>
    %c0_40 = arith.constant 0 : index
    %c34 = arith.constant 34 : index
    %103 = vector.load %arg7[%c0_40, %c34] : memref<4x290xf32, #tpu.memory_space<vmem>>, vector<4x256xf32>
    %104 = vector.extract_strided_slice %52 {offsets = [8, 0, 0], sizes = [1, 4, 1], strides = [1, 1, 1]} : vector<9x4x1xf32> to vector<1x4x1xf32>
    %105 = vector.shape_cast %104 : vector<1x4x1xf32> to vector<4x1xf32>
    %106 = vector.broadcast %105 : vector<4x1xf32> to vector<4x256xf32>
    %107 = arith.mulf %103, %106 : vector<4x256xf32>
    %108 = arith.addf %102, %107 : vector<4x256xf32>
    %cst_41 = arith.constant 0.000000e+00 : f32
    %109 = vector.shape_cast %50 : vector<1x256xi1> to vector<1x256xi1>
    %110 = vector.broadcast %109 : vector<1x256xi1> to vector<4x256xi1>
    %111 = vector.broadcast %cst_41 : f32 to vector<4x256xf32>
    %112 = arith.select %110, %108, %111 : vector<4x256xi1>, vector<4x256xf32>
    %113 = arith.addf %91, %112 : vector<4x256xf32>
    %c0_42 = arith.constant 0 : index
    %c0_43 = arith.constant 0 : index
    %c0_44 = arith.constant 0 : index
    %114 = vector.load %arg5[%c0_42, %c0_43, %c0_44] : memref<1x4x1xf32, #tpu.memory_space<vmem>>, vector<1x4x1xf32>
    %115 = vector.shape_cast %114 : vector<1x4x1xf32> to vector<4x1xf32>
    %116 = vector.broadcast %115 : vector<4x1xf32> to vector<4x256xf32>
    %117 = arith.addf %113, %116 : vector<4x256xf32>
    %cst_45 = arith.constant 0.000000e+00 : f32
    %118 = vector.broadcast %cst_45 : f32 to vector<4x256xf32>
    %119 = arith.maximumf %117, %118 : vector<4x256xf32>
    %c0_46 = arith.constant 0 : index
    %c4 = arith.constant 4 : index
    %c0_47 = arith.constant 0 : index
    %120 = vector.load %arg6[%c0_46, %c4, %c0_47] : memref<1x8x256xf32, #tpu.memory_space<vmem>>, vector<1x4x256xf32>
    %121 = vector.shape_cast %120 : vector<1x4x256xf32> to vector<4x256xf32>
    %122 = vector.shape_cast %119 : vector<4x256xf32> to vector<1x4x256xf32>
    tpu.vector_store %arg6[%c0_46, %c4, %c0_47], %122 {strides = array<i32>} : memref<1x8x256xf32, #tpu.memory_space<vmem>>, vector<1x4x256xf32>,
    return
  }
  func.func @transform_0(%arg0: i32) -> (i32, i32, i32) {
    %c0_i32 = arith.constant 0 : i32
    %c0_i32_0 = arith.constant 0 : i32
    %c0_i32_1 = arith.constant 0 : i32
    return %arg0, %c0_i32, %c0_i32_0 : i32, i32, i32
  }
  func.func @transform_1(%arg0: i32) -> (i32, i32) {
    %c0_i32 = arith.constant 0 : i32
    %c0_i32_0 = arith.constant 0 : i32
    %c0_i32_1 = arith.constant 0 : i32
    return %c0_i32, %c0_i32_0 : i32, i32
  }
  func.func @transform_2(%arg0: i32) -> (i32, i32) {
    %c0_i32 = arith.constant 0 : i32
    %c0_i32_0 = arith.constant 0 : i32
    %c0_i32_1 = arith.constant 0 : i32
    return %c0_i32, %c0_i32_0 : i32, i32
  }
  func.func @transform_3(%arg0: i32) -> (i32, i32, i32, i32) {
    %c0_i32 = arith.constant 0 : i32
    %c0_i32_0 = arith.constant 0 : i32
    %c0_i32_1 = arith.constant 0 : i32
    %c0_i32_2 = arith.constant 0 : i32
    %c0_i32_3 = arith.constant 0 : i32
    return %c0_i32, %c0_i32_0, %c0_i32_1, %c0_i32_2 : i32, i32, i32, i32
  }
  func.func @transform_4(%arg0: i32) -> (i32, i32, i32) {
    %c0_i32 = arith.constant 0 : i32
    %c0_i32_0 = arith.constant 0 : i32
    %c0_i32_1 = arith.constant 0 : i32
    %c0_i32_2 = arith.constant 0 : i32
    return %c0_i32, %c0_i32_0, %c0_i32_1 : i32, i32, i32
  }
  func.func @transform_5(%arg0: i32) -> (i32, i32, i32) {
    %c0_i32 = arith.constant 0 : i32
    %c0_i32_0 = arith.constant 0 : i32
    %c0_i32_1 = arith.constant 0 : i32
    return %arg0, %c0_i32, %c0_i32_0 : i32, i32, i32
  }
}

</mosaic_0001>

<llo_original>
// kernel: tpu_custom_call.1
$region0: #{tpu_custom_call.1}
  #allocation0 [shape = 'u32[]', space=smem, size = 0x4, offset = 0x4, fixed_abs, tag = 'smem constant byte address 0x4 - core index']
  #allocation1 [shape = 'u32[144,128]{1,0:T(1,128)}', space=vmem, size = 0x12000, scoped, tag = 'internal scratch']
  #allocation2 [shape = 'f32[4,290]{1,0:T(4,128)}', space=vmem, size = 0x1800, scoped, tag = 'scratch operand']
  %s0 = inlined_call_operand.vmem [shape: f32[2,4,256], index: 0, kind: input, shape index: {}]
  %s1 = inlined_call_operand.vmem [shape: f32[4,4], index: 1, kind: input, shape index: {}]
  %s2 = inlined_call_operand.vmem [shape: f32[4,1], index: 2, kind: input, shape index: {}]
  %s3 = inlined_call_operand.vmem [shape: f32[1,9,4,1], index: 3, kind: input, shape index: {}]
  %s4 = inlined_call_operand.vmem [shape: f32[1,4,1], index: 4, kind: input, shape index: {}]
  %s5 = inlined_call_operand.hbm [shape: f32[2,8,256], index: 5, kind: output, shape index: {}]
  %s6 = sld [smem:[#allocation0]]
  $region53: #{tpu_custom_call.1} parent=0
    _
  %s8 = ssub.s32 1, %s6
  %s9 = scalar_select 0, %s8, %s6
  $region1: #{tpu_custom_call.1} parent=0
    #allocation3 [shape = 'u8[16384]{0}', space=vmem, size = 0x4000, scoped, tag = 'output window, operand 0']
    #allocation4 [shape = 's32[2]{0}', space=sflag, size = 0x8, scoped, tag = 'scoped memory for tpu_custom_call.1']
    %10 = vsyncpa [#allocation4], 0
    %s11 = scalar_lea.sflag [#allocation4], 1
    %12 = vsyncpa %s11, 0
    loop: start=0, step=1, limit=4
    $region2: #{tpu_custom_call.1} parent=1 // loop_pre_header
      _
    $region3: #{tpu_custom_call.1} parent=1 // loop_header
      %s14 = sphi 0, %s18
      %p15 = scmp.ge.s32.totalorder %s14, 4
      %s24 = sphi 0, %s26
      %s27 = sphi 0, %s24
      %s28 = sphi 0, %s27
      %s44 = sphi 0, %s28
      %s48 = sphi 0, %s48
      %s50 = sphi 0, %s48
      %s51 = sphi 0, %s50
      %s65 = sphi 0, %s51
      %s69 = sphi 0, %s69
      %s71 = sphi 0, %s69
      %s72 = sphi 0, %s71
      %s86 = sphi 0, %s72
      %s90 = sphi 0, %s90
      %s92 = sphi 0, %s90
      %s93 = sphi 0, %s92
      %s107 = sphi 0, %s93
      %s111 = sphi 0, %s111
      %s113 = sphi 0, %s111
      %s114 = sphi 0, %s113
      %s128 = sphi 0, %s114
      %s134 = sphi 0, %s136
      %s137 = sphi 0, %s134
      %s138 = sphi 0, %s137
      %s154 = sphi 0, %s138
    $region4: #{tpu_custom_call.1} parent=1 // loop_header_branch
      %17 = sbr.rel (%p15) target = $region8
    $region5: #{tpu_custom_call.1} parent=1 // loop_body
      %s19 = ssub.s32 %s14, 1
      %s20 = ssub.s32 %s14, 2
      %s21 = sadd.s32 %s14, 1
      %s22 = ssub.s32 %s14, %s21
      %p23 = scmp.eq.s32.totalorder %s22, 0
      %s25 = sadd.s32 %s24, 1
      %s26 = scalar_select %p23, %s24, %s25
      %p29 = pneg %p23
      %p30 = scmp.eq.s32.totalorder %s14, 1
      %p31 = por %p29, %p30
      %p32 = scmp.ne.s32.totalorder %s24, %s27
      %p33 = scmp.eq.s32.totalorder %s14, 0
      %p34 = por %p32, %p33
      %p35 = scmp.ne.s32.totalorder %s24, %s27
      %p36 = scmp.eq.s32.totalorder %s19, 1
      %p37 = por %p35, %p36
      %p38 = scmp.ne.s32.totalorder %s27, %s28
      %p39 = scmp.eq.s32.totalorder %s19, 0
      %p40 = por %p38, %p39
      %p41 = scmp.ne.s32.totalorder %s27, %s28
      %p42 = scmp.eq.s32.totalorder %s20, 1
      %p43 = por %p41, %p42
      %p45 = scmp.ne.s32.totalorder %s28, %s44
      %p46 = scmp.eq.s32.totalorder %s20, 0
      %p47 = por %p45, %p46
      %s49 = sadd.s32 %s48, 1
      %p52 = scmp.eq.s32.totalorder %s14, 1
      %p53 = scmp.ne.s32.totalorder %s48, %s50
      %p54 = scmp.eq.s32.totalorder %s14, 0
      %p55 = por %p53, %p54
      %p56 = scmp.ne.s32.totalorder %s48, %s50
      %p57 = scmp.eq.s32.totalorder %s19, 1
      %p58 = por %p56, %p57
      %p59 = scmp.ne.s32.totalorder %s50, %s51
      %p60 = scmp.eq.s32.totalorder %s19, 0
      %p61 = por %p59, %p60
      %p62 = scmp.ne.s32.totalorder %s50, %s51
      %p63 = scmp.eq.s32.totalorder %s20, 1
      %p64 = por %p62, %p63
      %p66 = scmp.ne.s32.totalorder %s51, %s65
      %p67 = scmp.eq.s32.totalorder %s20, 0
      %p68 = por %p66, %p67
      %s70 = sadd.s32 %s69, 1
      %p73 = scmp.eq.s32.totalorder %s14, 1
      %p74 = scmp.ne.s32.totalorder %s69, %s71
      %p75 = scmp.eq.s32.totalorder %s14, 0
      %p76 = por %p74, %p75
      %p77 = scmp.ne.s32.totalorder %s69, %s71
      %p78 = scmp.eq.s32.totalorder %s19, 1
      %p79 = por %p77, %p78
      %p80 = scmp.ne.s32.totalorder %s71, %s72
      %p81 = scmp.eq.s32.totalorder %s19, 0
      %p82 = por %p80, %p81
      %p83 = scmp.ne.s32.totalorder %s71, %s72
      %p84 = scmp.eq.s32.totalorder %s20, 1
      %p85 = por %p83, %p84
      %p87 = scmp.ne.s32.totalorder %s72, %s86
      %p88 = scmp.eq.s32.totalorder %s20, 0
      %p89 = por %p87, %p88
      %s91 = sadd.s32 %s90, 1
      %p94 = scmp.eq.s32.totalorder %s14, 1
      %p95 = scmp.ne.s32.totalorder %s90, %s92
      %p96 = scmp.eq.s32.totalorder %s14, 0
      %p97 = por %p95, %p96
      %p98 = scmp.ne.s32.totalorder %s90, %s92
      %p99 = scmp.eq.s32.totalorder %s19, 1
      %p100 = por %p98, %p99
      %p101 = scmp.ne.s32.totalorder %s92, %s93
      %p102 = scmp.eq.s32.totalorder %s19, 0
      %p103 = por %p101, %p102
      %p104 = scmp.ne.s32.totalorder %s92, %s93
      %p105 = scmp.eq.s32.totalorder %s20, 1
      %p106 = por %p104, %p105
      %p108 = scmp.ne.s32.totalorder %s93, %s107
      %p109 = scmp.eq.s32.totalorder %s20, 0
      %p110 = por %p108, %p109
      %s112 = sadd.s32 %s111, 1
      %p115 = scmp.eq.s32.totalorder %s14, 1
      %p116 = scmp.ne.s32.totalorder %s111, %s113
      %p117 = scmp.eq.s32.totalorder %s14, 0
      %p118 = por %p116, %p117
      %p119 = scmp.ne.s32.totalorder %s111, %s113
      %p120 = scmp.eq.s32.totalorder %s19, 1
      %p121 = por %p119, %p120
      %p122 = scmp.ne.s32.totalorder %s113, %s114
      %p123 = scmp.eq.s32.totalorder %s19, 0
      %p124 = por %p122, %p123
      %p125 = scmp.ne.s32.totalorder %s113, %s114
      %p126 = scmp.eq.s32.totalorder %s20, 1
      %p127 = por %p125, %p126
      %p129 = scmp.ne.s32.totalorder %s114, %s128
      %p130 = scmp.eq.s32.totalorder %s20, 0
      %p131 = por %p129, %p130
      %s132 = ssub.s32 %s14, %s21
      %p133 = scmp.eq.s32.totalorder %s132, 0
      %s135 = sadd.s32 %s134, 1
      %s136 = scalar_select %p133, %s134, %s135
      %p139 = pneg %p133
      %p140 = scmp.eq.s32.totalorder %s14, 1
      %p141 = por %p139, %p140
      %p142 = scmp.ne.s32.totalorder %s134, %s137
      %p143 = scmp.eq.s32.totalorder %s14, 0
      %p144 = por %p142, %p143
      %p145 = scmp.ne.s32.totalorder %s134, %s137
      %p146 = scmp.eq.s32.totalorder %s19, 1
      %p147 = por %p145, %p146
      %p148 = scmp.ne.s32.totalorder %s137, %s138
      %p149 = scmp.eq.s32.totalorder %s19, 0
      %p150 = por %p148, %p149
      %p151 = scmp.ne.s32.totalorder %s137, %s138
      %p152 = scmp.eq.s32.totalorder %s20, 1
      %p153 = por %p151, %p152
      %p155 = scmp.ne.s32.totalorder %s138, %s154
      %p156 = scmp.eq.s32.totalorder %s20, 0
      %p157 = por %p155, %p156
      %p158 = scmp.le.s32.totalorder 1, %s14
      %p159 = scmp.lt.s32.totalorder %s14, 3
      %p160 = pnand %p158, %p159
      %p161 = pneg %p160
      // Predicated region
      $region9: #{tpu_custom_call.1} parent=5 // pred_check
        _
      $region10: #{tpu_custom_call.1} parent=5 // pred_check_branch
        %163 = sbr.rel (%p160) target = $region12
      $region11: #{tpu_custom_call.1} parent=5 // pred_region
        %s164 = ssub.s32 %s14, 1
        // Predicated region
        $region13: #{tpu_custom_call.1} parent=11 // pred_check
          %p165 = pneg %p61
        $region14: #{tpu_custom_call.1} parent=11 // pred_check_branch
          %167 = sbr.rel (%p165) target = $region16
        $region15: #{tpu_custom_call.1} parent=11 // pred_region
          _
        $region16: #{tpu_custom_call.1} parent=11 // pred_fallthru
          _
        // Predicated region
        $region17: #{tpu_custom_call.1} parent=11 // pred_check
          %p168 = pneg %p82
        $region18: #{tpu_custom_call.1} parent=11 // pred_check_branch
          %170 = sbr.rel (%p168) target = $region20
        $region19: #{tpu_custom_call.1} parent=11 // pred_region
          _
        $region20: #{tpu_custom_call.1} parent=11 // pred_fallthru
          _
        // Predicated region
        $region21: #{tpu_custom_call.1} parent=11 // pred_check
          %p171 = pneg %p103
        $region22: #{tpu_custom_call.1} parent=11 // pred_check_branch
          %173 = sbr.rel (%p171) target = $region24
        $region23: #{tpu_custom_call.1} parent=11 // pred_region
          _
        $region24: #{tpu_custom_call.1} parent=11 // pred_fallthru
          _
        // Predicated region
        $region25: #{tpu_custom_call.1} parent=11 // pred_check
          %p174 = pneg %p124
        $region26: #{tpu_custom_call.1} parent=11 // pred_check_branch
          %176 = sbr.rel (%p174) target = $region28
        $region27: #{tpu_custom_call.1} parent=11 // pred_region
          _
        $region28: #{tpu_custom_call.1} parent=11 // pred_fallthru
          _
      $region12: #{tpu_custom_call.1} parent=5 // pred_fallthru
        _
      %p177 = scmp.lt.s32.totalorder %s14, 2
      // Predicated region
      $region29: #{tpu_custom_call.1} parent=5 // pred_check
        %p178 = pneg %p177
      $region30: #{tpu_custom_call.1} parent=5 // pred_check_branch
        %180 = sbr.rel (%p178) target = $region32
      $region31: #{tpu_custom_call.1} parent=5 // pred_region
        // Predicated region
        $region33: #{tpu_custom_call.1} parent=31 // pred_check
          %p181 = pneg %p34
        $region34: #{tpu_custom_call.1} parent=31 // pred_check_branch
          %183 = sbr.rel (%p181) target = $region36
        $region35: #{tpu_custom_call.1} parent=31 // pred_region
          %p184 = scmp.lt.s32.totalorder %s14, 1
          %s185 = scalar_select %p184, %s14, 1
          %s186 = smul.addr %s185, 2
          %s187 = smul.addr %s186, 4
          %s188 = scalar_lea.vmem %s0, %s187
        $region36: #{tpu_custom_call.1} parent=31 // pred_fallthru
          _
      $region32: #{tpu_custom_call.1} parent=5 // pred_fallthru
        _
      %p189 = scmp.le.s32.totalorder 1, %s14
      %p190 = scmp.lt.s32.totalorder %s14, 3
      %p191 = pnand %p189, %p190
      %p192 = pneg %p191
      // Predicated region
      $region37: #{tpu_custom_call.1} parent=5 // pred_check
        _
      $region38: #{tpu_custom_call.1} parent=5 // pred_check_branch
        %194 = sbr.rel (%p191) target = $region40
      $region39: #{tpu_custom_call.1} parent=5 // pred_region
        %s195 = ssub.s32 %s14, 1
        %p196 = scmp.lt.s32.totalorder %s19, 1
        %s197 = scalar_select %p196, %s19, 1
        %s198 = smul.addr %s197, 2
        %s199 = smul.addr %s198, 4
        %s200 = scalar_lea.vmem %s0, %s199
        %p201 = pneg %p40
        %p202 = pneg %p37
        %p203 = pneg %p61
        %p204 = pneg %p58
        %p205 = pneg %p82
        %p206 = pneg %p79
        %p207 = pneg %p103
        %p208 = pneg %p100
        %p209 = pneg %p124
        %p210 = pneg %p121
        %p211 = pneg %p150
        %p212 = pneg %p147
        %s213 = sand.u32 %s137, 1
        %s214 = scalar_lea.sflag [#allocation4], %s213
        %s215 = sand.u32 %s137, 1
        %s216 = smul.addr %s215, 16
        %s217 = scalar_lea.vmem [#allocation3], %s216
        %p218 = scmp.lt.s32.totalorder %s19, 1
        %s219 = scalar_select %p218, %s19, 1
        %s220 = smul.addr %s219, 2
        %s221 = smul.addr %s220, 4
        %s222 = scalar_lea.vmem %s0, %s221
        %v223 = vld [vmem:[%s1] sm:$0xf]
        %v224 = vld [vmem:[%s222] sm:$0xff]
        %v225 = vld [vmem:[%s2] sm:$0xf]
        %227 = vset.pattern.permute.xlu0 0
        %228 = vperm.xlu0 %227, %v225
        %v229 = vpop.permute.xlu0 %228
        %v232 = vcombine.high %v224, %v224
        %vm233 = vcmask 31744
        %v235 = vsel %vm233, %v223, 0
        %vm237 = vcmask 1043456
        %v238 = vsel %vm237, %v224, 0
        %v240 = vsel %vm237, %v232, 0
        %242 = vmatprep.subr.mxu0 0.0
        %243 = vmatpush1.msra.mxu0 0.0
        %244 = vmatprep.subr.mxu0 0.0
        %245 = vmatpush1.msra.mxu0 0.0
        %246 = vmatprep.subr.mxu0 0.0
        %247 = vmatpush1.msra.mxu0 0.0
        %248 = vmatprep.subr.mxu0 0.0
        %249 = vmatpush1.msra.mxu0 0.0
        %250 = vmatprep.subr.mxu0 0.0
        %251 = vmatpush1.msra.mxu0 0.0
        %252 = vmatprep.subr.mxu0 0.0
        %253 = vmatpush1.msra.mxu0 0.0
        %254 = vmatprep.subr.mxu0 0.0
        %255 = vmatpush1.msra.mxu0 0.0
        %256 = vmatprep.subr.mxu0 0.0
        %257 = vmatpush1.msra.mxu0 0.0
        %258 = vmatprep.subr.mxu0 0.0
        %259 = vmatpush1.msra.mxu0 0.0
        %260 = vmatprep.subr.mxu0 0.0
        %261 = vmatpush1.msra.mxu0 0.0
        %262 = vmatprep.subr.mxu0 0.0
        %263 = vmatpush1.msra.mxu0 0.0
        %264 = vmatprep.subr.mxu0 0.0
        %265 = vmatpush1.msra.mxu0 0.0
        %266 = vmatprep.subr.mxu0 0.0
        %267 = vmatpush1.msra.mxu0 0.0
        %268 = vmatprep.subr.mxu0 0.0
        %269 = vmatpush1.msra.mxu0 0.0
        %270 = vmatprep.subr.mxu0 0.0
        %271 = vmatpush1.msra.mxu0 0.0
        %272 = vmatprep.subr.mxu0 %v240
        %273 = vmatpush1.msra.mxu0 %v238
        %274 = vmatprep.subr.mxu0 0.0
        %275 = vmatpush2.msra.mxu0 0.0
        %276 = vmatprep.subr.mxu0 0.0
        %277 = vmatpush2.msra.mxu0 0.0
        %278 = vmatprep.subr.mxu0 0.0
        %279 = vmatpush2.msra.mxu0 0.0
        %280 = vmatprep.subr.mxu0 0.0
        %281 = vmatpush2.msra.mxu0 0.0
        %282 = vmatprep.subr.mxu0 0.0
        %283 = vmatpush2.msra.mxu0 0.0
        %284 = vmatprep.subr.mxu0 0.0
        %285 = vmatpush2.msra.mxu0 0.0
        %286 = vmatprep.subr.mxu0 0.0
        %287 = vmatpush2.msra.mxu0 0.0
        %288 = vmatprep.subr.mxu0 0.0
        %289 = vmatpush2.msra.mxu0 0.0
        %290 = vmatprep.subr.mxu0 0.0
        %291 = vmatpush2.msra.mxu0 0.0
        %292 = vmatprep.subr.mxu0 0.0
        %293 = vmatpush2.msra.mxu0 0.0
        %294 = vmatprep.subr.mxu0 0.0
        %295 = vmatpush2.msra.mxu0 0.0
        %296 = vmatprep.subr.mxu0 0.0
        %297 = vmatpush2.msra.mxu0 0.0
        %298 = vmatprep.subr.mxu0 0.0
        %299 = vmatpush2.msra.mxu0 0.0
        %300 = vmatprep.subr.mxu0 0.0
        %301 = vmatpush2.msra.mxu0 0.0
        %302 = vmatprep.subr.mxu0 0.0
        %303 = vmatpush2.msra.mxu0 0.0
        %304 = vmatprep.subr.mxu0 0.0
        %305 = vmatpush2.msra.mxu0 0.0
        %306 = vmatprep.mubr.f32.mxu0 0.0
        %307 = vmatmul.mubr.f32.gmra.mxu0 %v235
        %v308 = vpop.f32.mrf.mxu0
        %v309 = vadd.f32 %v229, %v308
        %v310 = vpop.f32.mrf.mxu0
        %v311 = vadd.f32 %v229, %v310
        %312 = vdwg.mxu0
        %v313 = vmax.f32 %v309, 0.0
        %v314 = vmax.f32 %v311, 0.0
        %315 = vst [vmem:[%s217] sm:$0xf] %v313
        %316 = vst [vmem:[%s217 + $0x8] sm:$0xf] %v314
        %v319 = vcombine.low %v313, %v314
        %320 = vrot.lane.b32.xlu0 %v319, 17
        %v321 = vpop.permute.xlu0 %320
        %v322 = vrot.slane %v321, 4
        %vm323 = vcmask 138240
        %v324 = vsel %vm323, %v322, %v321
        %vm327 = vcmask 1043592
        %vm328 = vcmask 1047556
        %vm329 = vmor %vm328, %vm327
        %330 = vst.msk [vmem:[#allocation2] sm:$0xff] %vm329, %v324
        %vm331 = vcmask 134144
        %332 = vst.msk [vmem:[#allocation2 + $0x8] sm:$0xf] %vm331, %v322
        %333 = vst.msk [vmem:[#allocation2] sm:$0xf] %vm331, 0.0
        %vm334 = vcmask 273544
        %335 = vst.msk [vmem:[#allocation2 + $0x8] sm:$0xf] %vm334, 0.0
        %v336 = vlaneseq
        %v337 = vand.u32 %v336, 127
        %v338 = vadd.s32 %v337, 128
        %vm339 = vcmp.lt.s32.totalorder %v337, 0
        %v340 = vsub.s32 0, %v337
        %v341 = vsel %vm339, %v340, %v337
        %v342 = vshrl.u32 %v341, 4
        %v343 = vand.u32 %v341, 15
        %v344 = vsub.s32 0, %v343
        %v345 = vsel %vm339, %v344, %v343
        %vm346 = vcmp.lt.s32.totalorder %v338, 0
        %v347 = vsub.s32 0, %v338
        %v348 = vsel %vm346, %v347, %v338
        %v349 = vshrl.u32 %v348, 4
        %v350 = vand.u32 %v348, 15
        %v351 = vsub.s32 0, %v350
        %v352 = vsel %vm346, %v351, %v350
        %vm353 = vcmp.ne.s32.totalorder %v345, 0
        %vm354 = vcmp.ne.s32.totalorder %v352, 0
        %vm355 = vcmp.lt.s32.totalorder %v345, 0
        %vm356 = vcmp.lt.s32.totalorder %v352, 0
        %vm357 = vmand %vm355, %vm353
        %vm358 = vmand %vm356, %vm354
        %v359 = vadd.s32 %v345, 16
        %v360 = vadd.s32 %v352, 16
        %v361 = vsel %vm357, %v359, %v345
        %v362 = vsel %vm358, %v360, %v352
        %v363 = vadd.s32 %v361, 4294967295
        %v364 = vadd.s32 %v362, 4294967295
        %vm365 = vcmp.ge.s32.totalorder %v363, 0
        %vm366 = vcmp.ge.s32.totalorder %v364, 0
        %vm367 = vcmp.lt.s32.totalorder %v363, 16
        %vm368 = vcmp.lt.s32.totalorder %v364, 16
        %vm369 = vmand %vm365, %vm367
        %vm370 = vmand %vm366, %vm368
        %v371 = vadd.s32 %v361, 1
        %v372 = vadd.s32 %v362, 1
        %vm373 = vcmp.ge.s32.totalorder %v371, 0
        %vm374 = vcmp.ge.s32.totalorder %v372, 0
        %vm375 = vcmp.lt.s32.totalorder %v371, 16
        %vm376 = vcmp.lt.s32.totalorder %v372, 16
        %vm377 = vmand %vm373, %vm375
        %vm378 = vmand %vm374, %vm376
        %v379 = vld [vmem:[%s3] sm:$0xf]
        %v380 = vld [vmem:[%s3 + $0x4] sm:$0xf]
        %v381 = vld [vmem:[%s3 + $0x8] sm:$0xf]
        %v382 = vld [vmem:[%s3 + $0xc] sm:$0xf]
        %v383 = vld [vmem:[%s3 + $0x10] sm:$0xf]
        %v384 = vld [vmem:[%s3 + $0x14] sm:$0xf]
        %v385 = vld [vmem:[%s3 + $0x18] sm:$0xf]
        %v386 = vld [vmem:[%s3 + $0x1c] sm:$0xf]
        %v387 = vld [vmem:[%s3 + $0x20] sm:$0xf]
        %v388 = vld [vmem:[#allocation2] sm:$0xff]
        %390 = vset.pattern.permute.xlu0 0
        %391 = vperm.xlu0 %390, %v379
        %v392 = vpop.permute.xlu0 %391
        %v394 = vunpack.c.l.s4 839922192
        %v395 = vunpack.c.0.s8 %v394
        %v396 = vlaneseq
        %v397 = vshrl.u32 %v396, 7
        %v398 = vsub.s32 %v395, %v397
        %v399 = vrot.slane %v392, %v398
        %v401 = vmul.f32 %v388, %v399
        %v402 = vld [vmem:[#allocation2] sm:$0xff]
        %v403 = vld [vmem:[#allocation2 + $0x8] sm:$0xf]
        %405 = vset.pattern.permute.xlu0 0
        %406 = vperm.xlu0 %405, %v382
        %v407 = vpop.permute.xlu0 %406
        %v409 = vunpack.c.l.s4 839922192
        %v410 = vunpack.c.0.s8 %v409
        %v411 = vlaneseq
        %v412 = vshrl.u32 %v411, 7
        %v413 = vsub.s32 %v410, %v412
        %v414 = vrot.slane %v407, %v413
        %v416 = vmul.f32 %v402, %v414
        %v417 = vmul.f32 %v403, %v414
        %420 = vrot.lane.b32.xlu0 %v416, 112
        %v421 = vpop.permute.xlu0 %420
        %422 = vrot.lane.b32.xlu0 %v417, 112
        %v423 = vpop.permute.xlu0 %422
        %v424 = vrot.slane %v421, 4
        %v425 = vrot.slane %v423, 4
        %v426 = vsel %vm237, %v424, %v425
        %vm427 = vcmask 916480
        %v428 = vsel %vm427, %v421, %v426
        %v430 = vadd.f32 %v401, %v428
        %432 = vset.pattern.permute.xlu0 0
        %433 = vperm.xlu0 %432, %v385
        %v434 = vpop.permute.xlu0 %433
        %v436 = vunpack.c.l.s4 839922192
        %v437 = vunpack.c.0.s8 %v436
        %v438 = vlaneseq
        %v439 = vshrl.u32 %v438, 7
        %v440 = vsub.s32 %v437, %v439
        %v441 = vrot.slane %v434, %v440
        %v443 = vmul.f32 %v402, %v441
        %v444 = vmul.f32 %v403, %v441
        %447 = vrot.lane.b32.xlu0 %v443, 96
        %v448 = vpop.permute.xlu0 %447
        %449 = vrot.lane.b32.xlu0 %v444, 96
        %v450 = vpop.permute.xlu0 %449
        %v451 = vrot.slane %v448, 4
        %v452 = vrot.slane %v450, 4
        %v453 = vsel %vm237, %v451, %v452
        %vm454 = vcmask 785408
        %v455 = vsel %vm454, %v448, %v453
        %v457 = vadd.f32 %v430, %v455
        %v458 = vsel %vm369, 1, 0
        %v459 = vsel %vm370, 1, 0
        %vm460 = vcmp.eq.s32.totalorder %v458, 1
        %vm461 = vcmp.eq.s32.totalorder %v459, 1
        %v463 = vcombine.high %v457, %v457
        %v465 = vsel %vm460, %v457, 0.0
        %v466 = vsel %vm461, %v463, 0.0
        %v467 = vld [vmem:[#allocation2] sm:$0xff]
        %v468 = vld [vmem:[#allocation2 + $0x8] sm:$0xf]
        %470 = vset.pattern.permute.xlu0 0
        %471 = vperm.xlu0 %470, %v380
        %v472 = vpop.permute.xlu0 %471
        %v474 = vunpack.c.l.s4 839922192
        %v475 = vunpack.c.0.s8 %v474
        %v476 = vlaneseq
        %v477 = vshrl.u32 %v476, 7
        %v478 = vsub.s32 %v475, %v477
        %v479 = vrot.slane %v472, %v478
        %v481 = vmul.f32 %v467, %v479
        %v482 = vmul.f32 %v468, %v479
        %484 = vset.pattern.permute.xlu0 0
        %485 = vperm.xlu0 %484, %v383
        %v486 = vpop.permute.xlu0 %485
        %v488 = vunpack.c.l.s4 839922192
        %v489 = vunpack.c.0.s8 %v488
        %v490 = vlaneseq
        %v491 = vshrl.u32 %v490, 7
        %v492 = vsub.s32 %v489, %v491
        %v493 = vrot.slane %v486, %v492
        %v495 = vmul.f32 %v467, %v493
        %v496 = vmul.f32 %v468, %v493
        %499 = vrot.lane.b32.xlu0 %v495, 112
        %v500 = vpop.permute.xlu0 %499
        %501 = vrot.lane.b32.xlu0 %v496, 112
        %v502 = vpop.permute.xlu0 %501
        %v503 = vrot.slane %v500, 4
        %v504 = vrot.slane %v502, 4
        %v505 = vsel %vm237, %v503, %v504
        %v506 = vsel %vm427, %v500, %v505
        %v509 = vadd.f32 %v481, %v506
        %v510 = vadd.f32 %v482, %v502
        %512 = vset.pattern.permute.xlu0 0
        %513 = vperm.xlu0 %512, %v386
        %v514 = vpop.permute.xlu0 %513
        %v516 = vunpack.c.l.s4 839922192
        %v517 = vunpack.c.0.s8 %v516
        %v518 = vlaneseq
        %v519 = vshrl.u32 %v518, 7
        %v520 = vsub.s32 %v517, %v519
        %v521 = vrot.slane %v514, %v520
        %v523 = vmul.f32 %v467, %v521
        %v524 = vmul.f32 %v468, %v521
        %527 = vrot.lane.b32.xlu0 %v523, 96
        %v528 = vpop.permute.xlu0 %527
        %529 = vrot.lane.b32.xlu0 %v524, 96
        %v530 = vpop.permute.xlu0 %529
        %v531 = vrot.slane %v528, 4
        %v532 = vrot.slane %v530, 4
        %v533 = vsel %vm237, %v531, %v532
        %v534 = vsel %vm454, %v528, %v533
        %v537 = vadd.f32 %v509, %v534
        %v538 = vadd.f32 %v510, %v530
        %v541 = vcombine.high %v537, %v537
        %542 = vrot.lane.b32.xlu0 %v537, 127
        %v543 = vpop.permute.xlu0 %542
        %544 = vrot.lane.b32.xlu0 %v541, 127
        %v545 = vpop.permute.xlu0 %544
        %546 = vrot.lane.b32.xlu0 %v538, 127
        %v547 = vpop.permute.xlu0 %546
        %vm548 = vcmask 1039360
        %v549 = vsel %vm548, %v543, %v545
        %v550 = vsel %vm548, %v545, %v547
        %v553 = vadd.f32 %v465, %v549
        %v554 = vadd.f32 %v466, %v550
        %v555 = vld [vmem:[#allocation2] sm:$0xff]
        %v556 = vld [vmem:[#allocation2 + $0x8] sm:$0xf]
        %558 = vset.pattern.permute.xlu0 0
        %559 = vperm.xlu0 %558, %v381
        %v560 = vpop.permute.xlu0 %559
        %v562 = vunpack.c.l.s4 839922192
        %v563 = vunpack.c.0.s8 %v562
        %v564 = vlaneseq
        %v565 = vshrl.u32 %v564, 7
        %v566 = vsub.s32 %v563, %v565
        %v567 = vrot.slane %v560, %v566
        %v569 = vmul.f32 %v555, %v567
        %v570 = vmul.f32 %v556, %v567
        %572 = vset.pattern.permute.xlu0 0
        %573 = vperm.xlu0 %572, %v384
        %v574 = vpop.permute.xlu0 %573
        %v576 = vunpack.c.l.s4 839922192
        %v577 = vunpack.c.0.s8 %v576
        %v578 = vlaneseq
        %v579 = vshrl.u32 %v578, 7
        %v580 = vsub.s32 %v577, %v579
        %v581 = vrot.slane %v574, %v580
        %v583 = vmul.f32 %v555, %v581
        %v584 = vmul.f32 %v556, %v581
        %587 = vrot.lane.b32.xlu0 %v583, 112
        %v588 = vpop.permute.xlu0 %587
        %589 = vrot.lane.b32.xlu0 %v584, 112
        %v590 = vpop.permute.xlu0 %589
        %v591 = vrot.slane %v588, 4
        %v592 = vrot.slane %v590, 4
        %v593 = vsel %vm237, %v591, %v592
        %v594 = vsel %vm427, %v588, %v593
        %v597 = vadd.f32 %v569, %v594
        %v598 = vadd.f32 %v570, %v590
        %600 = vset.pattern.permute.xlu0 0
        %601 = vperm.xlu0 %600, %v387
        %v602 = vpop.permute.xlu0 %601
        %v604 = vunpack.c.l.s4 839922192
        %v605 = vunpack.c.0.s8 %v604
        %v606 = vlaneseq
        %v607 = vshrl.u32 %v606, 7
        %v608 = vsub.s32 %v605, %v607
        %v609 = vrot.slane %v602, %v608
        %v611 = vmul.f32 %v555, %v609
        %v612 = vmul.f32 %v556, %v609
        %615 = vrot.lane.b32.xlu0 %v611, 96
        %v616 = vpop.permute.xlu0 %615
        %617 = vrot.lane.b32.xlu0 %v612, 96
        %v618 = vpop.permute.xlu0 %617
        %v619 = vrot.slane %v616, 4
        %v620 = vrot.slane %v618, 4
        %v621 = vsel %vm237, %v619, %v620
        %v622 = vsel %vm454, %v616, %v621
        %v625 = vadd.f32 %v597, %v622
        %v626 = vadd.f32 %v598, %v618
        %v627 = vsel %vm377, 1, 0
        %v628 = vsel %vm378, 1, 0
        %vm629 = vcmp.eq.s32.totalorder %v627, 1
        %vm630 = vcmp.eq.s32.totalorder %v628, 1
        %v633 = vcombine.high %v625, %v625
        %634 = vrot.lane.b32.xlu0 %v625, 126
        %v635 = vpop.permute.xlu0 %634
        %636 = vrot.lane.b32.xlu0 %v633, 126
        %v637 = vpop.permute.xlu0 %636
        %638 = vrot.lane.b32.xlu0 %v626, 126
        %v639 = vpop.permute.xlu0 %638
        %vm640 = vcmask 1031168
        %v641 = vsel %vm640, %v635, %v637
        %v642 = vsel %vm640, %v637, %v639
        %v645 = vsel %vm629, %v641, 0.0
        %v646 = vsel %vm630, %v642, 0.0
        %v647 = vadd.f32 %v553, %v645
        %v648 = vadd.f32 %v554, %v646
        %v649 = vld [vmem:[%s4] sm:$0xf]
        %651 = vset.pattern.permute.xlu0 0
        %652 = vperm.xlu0 %651, %v649
        %v653 = vpop.permute.xlu0 %652
        %v655 = vadd.f32 %v647, %v653
        %v656 = vadd.f32 %v648, %v653
        %v657 = vmax.f32 %v655, 0.0
        %v658 = vmax.f32 %v656, 0.0
        %v661 = vrot.slane %v657, 4
        %v662 = vrot.slane %v658, 4
        %665 = vst [vmem:[%s217] sm:$0xf0] %v661
        %666 = vst [vmem:[%s217 + $0x8] sm:$0xf0] %v662
        %s667 = sand.u32 %s137, 1
        %s668 = scalar_lea.sflag [#allocation4], %s667
        %s669 = sand.u32 %s137, 1
        %s670 = smul.addr %s669, 16
        %s671 = scalar_lea.vmem [#allocation3], %s670
        // Predicated region
        $region41: #{tpu_custom_call.1} parent=39 // pred_check
          %p672 = pneg %p147
        $region42: #{tpu_custom_call.1} parent=39 // pred_check_branch
          %674 = sbr.rel (%p672) target = $region44
        $region43: #{tpu_custom_call.1} parent=39 // pred_region
          %s676 = ssub.s32 256, 256
          %677 = vsyncadd %s668, %s676
          %s678 = smul.addr %s19, 2
          %s679 = smul.addr %s678, 128
          %s680 = scalar_lea.hbm %s5, %s679
          %s682 = sshll.u32 %s671, 4
          %s683 = int_to_ptr.vmem [resolvable:$true] %s682
          %685 = dma.vmem_to_hbm [thread:$0]  %s683, 256, %s680, %s668
        $region44: #{tpu_custom_call.1} parent=39 // pred_fallthru
          _
      $region40: #{tpu_custom_call.1} parent=5 // pred_fallthru
        _
      %p686 = scmp.le.s32.totalorder 2, %s14
      // Predicated region
      $region45: #{tpu_custom_call.1} parent=5 // pred_check
        %p687 = pneg %p686
      $region46: #{tpu_custom_call.1} parent=5 // pred_check_branch
        %689 = sbr.rel (%p687) target = $region48
      $region47: #{tpu_custom_call.1} parent=5 // pred_region
        %s690 = ssub.s32 %s14, 2
        // Predicated region
        $region49: #{tpu_custom_call.1} parent=47 // pred_check
          %p691 = pneg %p153
        $region50: #{tpu_custom_call.1} parent=47 // pred_check_branch
          %693 = sbr.rel (%p691) target = $region52
        $region51: #{tpu_custom_call.1} parent=47 // pred_region
          %s694 = sand.u32 %s138, 1
          %s695 = scalar_lea.sflag [#allocation4], %s694
          %s696 = sand.u32 %s138, 1
          %s697 = smul.addr %s696, 16
          %s698 = scalar_lea.vmem [#allocation3], %s697
          %699 = dma.done %s695, 256
        $region52: #{tpu_custom_call.1} parent=47 // pred_fallthru
          _
      $region48: #{tpu_custom_call.1} parent=5 // pred_fallthru
        _
    $region6: #{tpu_custom_call.1} parent=1 // loop_footer
      %s18 = sadd.s32 1, %s14
    $region7: #{tpu_custom_call.1} parent=1 // loop_footer_branch
      %13 = sbr.rel target = $region3
    $region8: #{tpu_custom_call.1} parent=1 // loop_exit
      _
    %700 = vsyncpa [#allocation4], 1
    %s701 = scalar_lea.sflag [#allocation4], 1
    %702 = vsyncpa %s701, 1

</llo_original>
